<compile_context>
chip_gen: v7x
topology: tpu7x:2x2x1
jax: 0.10.0
libtpu: 0.0.40
codegen_flags: <defaults>
</compile_context>

<pallas_src>
import math
from functools import partial

import jax
import jax.numpy as jnp
from jax.experimental import pallas as pl
from jax.experimental.pallas import tpu as pltpu


def _round_up(a, b):
    return (a + b - 1) // b * b


_VMEM_CAP = None


def _vmem_capacity_bytes():
    """Per-core VMEM capacity (generation aware); conservative 64 MiB fallback (v7x-like)."""
    global _VMEM_CAP
    if _VMEM_CAP is None:
        cap = 0
        try:
            cap = int(getattr(pltpu.get_tpu_info(), "vmem_capacity_bytes", 0))
        except Exception:
            cap = 0
        _VMEM_CAP = cap if cap > 0 else 64 * 2 ** 20
    return _VMEM_CAP


# ------------------- fused RMSNorm + router gate logits -------------------

def _rms_router_kernel(x_ref, rw_ref, wg_ref, o_ref, *, eps):
    x = x_ref[...].astype(jnp.float32)
    var = jnp.mean(x * x, axis=-1, keepdims=True)
    xn = x * jax.lax.rsqrt(var + eps) * rw_ref[...].astype(jnp.float32)
    # bf16 operands on the MXU (native fast path), f32 accumulation.
    o_ref[...] = jnp.dot(xn.astype(jnp.bfloat16), wg_ref[...],
                         preferred_element_type=jnp.float32)


def rms_router_logits_pallas(x2d, rms_weight, w_gate_padded, *, eps=1e-6):
    """[N,H] -> router logits [N, E_pad] with RMSNorm fused (single HBM read of x)."""
    N, H = x2d.shape
    E_pad = w_gate_padded.shape[-1]
    vmem_cap = _vmem_capacity_bytes()

    tn = 512 if N >= 512 else _round_up(N, 8)
    # keep double-buffered x / logits tiles within ~30% of VMEM for very large H
    while tn > 64 and 2 * tn * (H * 4 + E_pad * 4) > 0.3 * vmem_cap:
        tn //= 2
    tn = max(_round_up(tn, 8), 8)
    N_pad = _round_up(N, tn)
    x_in = x2d if N_pad == N else jnp.pad(x2d, ((0, N_pad - N), (0, 0)))

    est = 2 * tn * (H * 4 + E_pad * 4) + 2 * (H * E_pad * 2 + H * 4)
    vmem_limit = int(min(max(2 * est, 32 * 2 ** 20), int(0.75 * vmem_cap)))

    out = pl.pallas_call(
        partial(_rms_router_kernel, eps=eps),
        out_shape=jax.ShapeDtypeStruct((N_pad, E_pad), jnp.float32),
        grid=(N_pad // tn,),
        in_specs=[
            pl.BlockSpec((tn, H), lambda i: (i, 0)),
            pl.BlockSpec((1, H), lambda i: (0, 0)),
            pl.BlockSpec((H, E_pad), lambda i: (0, 0)),
        ],
        out_specs=pl.BlockSpec((tn, E_pad), lambda i: (i, 0)),
        compiler_params=pltpu.CompilerParams(
            dimension_semantics=("parallel",),
            vmem_limit_bytes=vmem_limit),
    )(x_in, rms_weight.reshape(1, H).astype(jnp.float32), w_gate_padded)
    return out[:N]


# ------------- expert SwiGLU FFN (fused dispatch gather, FH-tiled, bf16 MXU) -------------

def _expert_ffn_kernel(slot_tok_ref, scale_ref, x_hbm_ref, w13_ref, w2_ref,
                       o_ref, xs_ref, acc_ref, dma_sem, *, tfh, cap):
    e = pl.program_id(0)
    f = pl.program_id(1)

    # Once per expert: DMA-gather the C rows of raw x straight from HBM into the f32
    # accumulator buffer, apply the gate weight (f32), cast once to bf16 into a resident
    # scratch, then zero the accumulator.  (Hoists the scale/cast out of the FH loop.)
    @pl.when(f == 0)
    def _():
        base = e * cap

        @pl.loop(0, cap)
        def _issue(s):
            tok = slot_tok_ref[base + s]
            pltpu.make_async_copy(x_hbm_ref.at[pl.ds(tok, 1)],
                                  acc_ref.at[pl.ds(s, 1)],
                                  dma_sem.at[0]).start()

        @pl.loop(0, cap)
        def _wait(s):
            # wait() only needs matching shape/sem; source index is irrelevant here.
            pltpu.make_async_copy(x_hbm_ref.at[pl.ds(0, 1)],
                                  acc_ref.at[pl.ds(s, 1)],
                                  dma_sem.at[0]).wait()

        xs_ref[...] = (acc_ref[...] * scale_ref[...]).astype(jnp.bfloat16)
        acc_ref[...] = jnp.zeros_like(acc_ref)

    xs = xs_ref[...]                                                       # [C, H] bf16
    h13 = jnp.dot(xs, w13_ref[...], preferred_element_type=jnp.float32)    # [C, 2*tfh]
    h = (jax.nn.silu(h13[:, :tfh]) * h13[:, tfh:]).astype(jnp.bfloat16)    # [C, tfh]
    acc_ref[...] += jnp.dot(h, w2_ref[...], preferred_element_type=jnp.float32)

    @pl.when(f == pl.num_programs(1) - 1)
    def _():
        o_ref[...] = acc_ref[...].astype(o_ref.dtype)


def moe_experts_ffn_pallas(slot_tok_flat, slot_scale, x_flat, w13, w2, *,
                           cap, tfh, out_dtype):
    E = slot_scale.shape[0]
    _, H = x_flat.shape
    two_fh_pad = w13.shape[-1]
    nf = two_fh_pad // (2 * tfh)
    vmem_cap = _vmem_capacity_bytes()

    out_size = jnp.dtype(out_dtype).itemsize
    est = (cap * H * 2                       # bf16 activation scratch
           + cap * H * 4                     # f32 accumulator / gather landing
           + 2 * cap * H * out_size          # double-buffered output block
           + 2 * cap * 128 * 4               # lane-padded slot_scale block
           + 2 * H * 2 * tfh * 2             # double-buffered [W1|W3] tile (bf16)
           + 2 * tfh * H * 2)                # double-buffered W2 tile (bf16)
    vmem_limit = int(min(max(int(1.5 * est) + (8 << 20), 32 * 2 ** 20),
                         int(0.75 * vmem_cap)))

    grid_spec = pltpu.PrefetchScalarGridSpec(
        num_scalar_prefetch=1,                                             # slot -> token table
        grid=(E, nf),
        in_specs=[
            pl.BlockSpec((None, cap, 1), lambda e, f, st: (e, 0, 0)),      # per-slot gate weight
            pl.BlockSpec(memory_space=pl.ANY),                             # raw x stays in HBM
            pl.BlockSpec((None, H, 2 * tfh), lambda e, f, st: (e, 0, f)),  # packed [W1|W3] tile
            pl.BlockSpec((None, tfh, H), lambda e, f, st: (e, f, 0)),      # W2 tile
        ],
        out_specs=pl.BlockSpec((None, cap, H), lambda e, f, st: (e, 0, 0)),
        scratch_shapes=[
            pltpu.VMEM((cap, H), jnp.bfloat16),   # gate-scaled bf16 activations (resident over f)
            pltpu.VMEM((cap, H), jnp.float32),    # gather landing / f32 accumulator
            pltpu.SemaphoreType.DMA((1,)),
        ],
    )
    return pl.pallas_call(
        partial(_expert_ffn_kernel, tfh=tfh, cap=cap),
        out_shape=jax.ShapeDtypeStruct((E, cap, H), out_dtype),
        grid_spec=grid_spec,
        compiler_params=pltpu.CompilerParams(
            dimension_semantics=("parallel", "arbitrary"),
            vmem_limit_bytes=vmem_limit),
    )(slot_tok_flat, slot_scale, x_flat, w13, w2)


# ------------------------------ parameters ------------------------------

def _swiglu_hidden(ffn_hidden_size, multiple_of):
    h = int(2 * ffn_hidden_size / 3)
    return multiple_of * ((h + multiple_of - 1) // multiple_of)


def init_params(key, hidden_size, ffn_hidden_size, num_experts, multiple_of, context_dim=64):
    FH = _swiglu_hidden(ffn_hidden_size, multiple_of)
    ks = jax.random.split(key, 6)
    return {
        "rms_weight": jnp.ones((hidden_size,), jnp.float32),
        "w_gate": 0.02 * jax.random.normal(ks[0], (hidden_size, num_experts), jnp.float32),
        "w_ctx_in": 0.02 * jax.random.normal(ks[1], (hidden_size, context_dim), jnp.float32),
        "w_ctx_gate": 0.02 * jax.random.normal(ks[2], (context_dim, num_experts), jnp.float32),
        "w1": (1.0 / math.sqrt(hidden_size)) *
              jax.random.normal(ks[3], (num_experts, hidden_size, FH), jnp.float32),
        "w3": (1.0 / math.sqrt(hidden_size)) *
              jax.random.normal(ks[4], (num_experts, hidden_size, FH), jnp.float32),
        "w2": (1.0 / math.sqrt(FH)) *
              jax.random.normal(ks[5], (num_experts, FH, hidden_size), jnp.float32),
    }


def prepare_params(params, *, fh_tile=None):
    """Pack/pad weights for the Pallas kernels: bf16 expert weights, per-tile [W1|W3] concat,
    FH padded to the tile (zero pad is exact: silu(0)*0 = 0, padded W2 rows are zero), bf16
    gate weight zero-padded to 128 lanes.  fh_tile / VMEM limits are generation-aware."""
    w1, w3, w2 = params["w1"], params["w3"], params["w2"]
    E, H, FH = w1.shape
    vmem_cap = _vmem_capacity_bytes()

    if fh_tile is None:
        fh_tile = 1024 if vmem_cap >= 96 * 2 ** 20 else 256   # v5e/v6e vs v7x
        while fh_tile > 128 and 12 * H * fh_tile > 0.4 * vmem_cap:
            fh_tile //= 2
        fh_tile = min(fh_tile, _round_up(FH, 128))
    FH_pad = _round_up(FH, fh_tile)
    nf = FH_pad // fh_tile
    pad_fh = FH_pad - FH

    w1p = jnp.pad(w1, ((0, 0), (0, 0), (0, pad_fh))).reshape(E, H, nf, fh_tile)
    w3p = jnp.pad(w3, ((0, 0), (0, 0), (0, pad_fh))).reshape(E, H, nf, fh_tile)
    w13 = jnp.stack([w1p, w3p], axis=3).reshape(E, H, 2 * FH_pad)   # per-tile [W1_t | W3_t]
    w2p = jnp.pad(w2, ((0, 0), (0, pad_fh), (0, 0)))

    E_pad = _round_up(E, 128)
    w_gate_p = jnp.pad(params["w_gate"], ((0, 0), (0, E_pad - E))).astype(jnp.bfloat16)

    packed = {
        "rms_weight": params["rms_weight"],
        "w_gate_padded": w_gate_p,
        "w_ctx_in": params["w_ctx_in"],
        "w_ctx_gate": params["w_ctx_gate"],
        "w13": w13.astype(jnp.bfloat16),
        "w2": w2p.astype(jnp.bfloat16),
    }
    meta = {"fh_tile": fh_tile}
    return packed, meta


# -------------------------------- forward --------------------------------

def byte_moe_forward(params, x, positions=None, prev_hidden=None, *,
                     num_experts, k, capacity_factor, aux_loss_coef, fh_tile):
    """Forward pass mirroring ByteMoELayer.forward (eval mode, dropout = identity)."""
    B, S, H = x.shape
    N = B * S
    E = num_experts
    capacity = max(1, int(math.ceil(capacity_factor * N * k / E)))   # logical capacity (drop policy)
    # >=16 rows keeps the bf16 (16,128) sublane tile dense; large buffers rounded to 128 so
    # the M dimension of both MXU matmuls stays dense.
    C_pad = _round_up(capacity, 16 if capacity < 256 else 128)

    x_flat = x.reshape(N, H).astype(jnp.float32)

    # --- fused RMSNorm + gate logits (router sees normed x; experts see raw x, as in ref) ---
    logits = rms_router_logits_pallas(
        x_flat, params["rms_weight"], params["w_gate_padded"])[:, :E]

    # --- context-aware bias (ByteContextAwareRouter, context_dim=64) ---
    if prev_hidden is None:
        prev_hidden = jnp.zeros((B, H), jnp.float32)
    context = jnp.tanh(prev_hidden.astype(jnp.float32) @ params["w_ctx_in"])   # [B, ctx]
    ctx_logits = context @ params["w_ctx_gate"]                                # [B, E]
    logits = (logits.reshape(B, S, E) + ctx_logits[:, None, :]).reshape(N, E)
    # TODO(synk): `positions` term of the original router is unspecified; omitted.

    probs = jax.nn.softmax(logits, axis=-1)                          # [N, E]
    top_w, top_idx = jax.lax.top_k(probs, k)                         # [N, k]

    # buffer slots via cumulative count (token-major, slot-minor priority)
    one_hot = jax.nn.one_hot(top_idx, E, dtype=jnp.int32)            # [N, k, E]
    flat_oh = one_hot.reshape(N * k, E)
    cum = jnp.cumsum(flat_oh, axis=0) - 1
    pos = jnp.sum(cum * flat_oh, axis=-1).reshape(N, k)              # [N, k]
    assigned = pos < capacity                                        # [N, k]

    # aux load-balancing loss
    importance = probs.mean(axis=0)
    load = flat_oh.sum(axis=0).astype(jnp.float32) / (N * k)
    aux_loss = aux_loss_coef * E * jnp.sum(importance * load)

    # --- dispatch tables: (expert, slot) -> token id (in-kernel DMA gather) + gate weight ---
    tok_ids = jnp.broadcast_to(jnp.arange(N, dtype=jnp.int32)[:, None], (N, k)).reshape(-1)
    e_flat = top_idx.reshape(-1).astype(jnp.int32)
    p_flat = pos.reshape(-1)
    dest = jnp.where(assigned.reshape(-1), e_flat * C_pad + p_flat, E * C_pad)  # dropped -> dummy

    # unfilled / dropped slots gather token 0 but with scale 0 -> exact zero rows
    slot_tok = jnp.zeros((E * C_pad + 1,), jnp.int32).at[dest].set(tok_ids)[:-1]
    slot_scale = (jnp.zeros((E * C_pad + 1,), jnp.float32)
                  .at[dest].set(top_w.reshape(-1))[:-1].reshape(E, C_pad, 1))

    # --- expert SwiGLU FFNs (Pallas hot path; gather fused, empty slots map to exact zeros) ---
    expert_outputs = moe_experts_ffn_pallas(
        slot_tok, slot_scale, x_flat, params["w13"], params["w2"],
        cap=C_pad, tfh=fh_tile, out_dtype=x.dtype)                   # [E, C_pad, H]

    # --- combine: sum (already gate-weighted) expert outputs back to tokens ---
    # TODO(synk): combine gather is plain JAX (data-dependent per-token row indices).
    p_clamped = jnp.minimum(pos, C_pad - 1)
    gathered = expert_outputs[top_idx, p_clamped]                    # [N, k, H]
    gathered = gathered * assigned[..., None].astype(gathered.dtype)
    token_outputs = gathered.sum(axis=1)                             # [N, H]

    out = token_outputs.reshape(B, S, H).astype(x.dtype)
    # nn.Dropout is identity in eval mode; omitted for determinism.
    return out, aux_loss


# ---------------------------------- main ----------------------------------

if __name__ == "__main__":
    hidden_size = 32
    ffn_hidden_size = 64
    num_experts = 4
    k = 2
    multiple_of = 16
    capacity_factor = 1.25
    aux_loss_coef = 0.01

    B, S = 2, 8

    key = jax.random.PRNGKey(0)
    k_param, k_x, k_prev = jax.random.split(key, 3)
    raw_params = init_params(k_param, hidden_size, ffn_hidden_size, num_experts, multiple_of)
    packed_params, meta = prepare_params(raw_params)

    x = jax.random.normal(k_x, (B, S, hidden_size), jnp.float32)
    prev_hidden = jax.random.normal(k_prev, (B, hidden_size), jnp.float32)

    # sanity-check the fused RMSNorm+router kernel against a pure-f32 reference
    x_flat = x.reshape(-1, hidden_size)
    logits_k = rms_router_logits_pallas(
        x_flat, packed_params["rms_weight"], packed_params["w_gate_padded"])[:, :num_experts]
    var = jnp.mean(x_flat * x_flat, axis=-1, keepdims=True)
    xn_ref = x_flat * jax.lax.rsqrt(var + 1e-6) * raw_params["rms_weight"]
    logits_ref = xn_ref @ raw_params["w_gate"]
    assert float(jnp.max(jnp.abs(logits_k - logits_ref))) < 2e-2

    fwd = jax.jit(partial(byte_moe_forward,
                          num_experts=num_experts, k=k,
                          capacity_factor=capacity_factor, aux_loss_coef=aux_loss_coef,
                          fh_tile=meta["fh_tile"]))

    out, aux_loss = fwd(packed_params, x, None, prev_hidden)
    jax.block_until_ready((out, aux_loss))

    assert out.shape == (B, S, hidden_size)
    assert aux_loss.shape == ()
    assert bool(jnp.all(jnp.isfinite(out)))
    assert bool(jnp.isfinite(aux_loss))
    print("KERNEL_OK")
</pallas_src>

<mosaic_0001>
module attributes {stable_mosaic.version = 11 : i64} {
  func.func @_rms_router_kernel(%arg0: i32, %arg1: memref<16x32xf32, #tpu.memory_space<vmem>>, %arg2: memref<1x32xf32, #tpu.memory_space<vmem>>, %arg3: memref<32x128xbf16, #tpu.memory_space<vmem>>, %arg4: memref<16x128xf32, #tpu.memory_space<vmem>>) attributes {dimension_semantics = [#tpu.dimension_semantics<parallel>], iteration_bounds = array<i64: 1>, scalar_prefetch = 0 : i64, scratch_operands = 0 : i64, tpu.core_type = #tpu.core_type<tc>, window_params = [{transform_indices = @transform_0, window_bounds = array<i64: 16, 32>}, {pipeline_mode = #tpu.pipeline_mode<synchronous>, transform_indices = @transform_1, window_bounds = array<i64: 1, 32>}, {pipeline_mode = #tpu.pipeline_mode<synchronous>, transform_indices = @transform_2, window_bounds = array<i64: 32, 128>}, {transform_indices = @transform_3, window_bounds = array<i64: 16, 128>}]} {
    %c0 = arith.constant 0 : index
    %c0_0 = arith.constant 0 : index
    %0 = vector.load %arg1[%c0, %c0_0] : memref<16x32xf32, #tpu.memory_space<vmem>>, vector<16x32xf32>
    %1 = arith.mulf %0, %0 : vector<16x32xf32>
    %cst = arith.constant dense<0.000000e+00> : vector<16xf32>
    %2 = vector.multi_reduction <add>, %1, %cst [1] : vector<16x32xf32> to vector<16xf32>
    %3 = vector.shape_cast %2 : vector<16xf32> to vector<16x1xf32>
    %cst_1 = arith.constant 3.200000e+01 : f32
    %4 = vector.broadcast %cst_1 : f32 to vector<16x1xf32>
    %5 = arith.divf %3, %4 : vector<16x1xf32>
    %cst_2 = arith.constant 9.99999997E-7 : f32
    %6 = vector.broadcast %cst_2 : f32 to vector<16x1xf32>
    %7 = arith.addf %5, %6 : vector<16x1xf32>
    %8 = math.rsqrt %7 : vector<16x1xf32>
    %9 = vector.broadcast %8 : vector<16x1xf32> to vector<16x32xf32>
    %10 = arith.mulf %0, %9 : vector<16x32xf32>
    %c0_3 = arith.constant 0 : index
    %c0_4 = arith.constant 0 : index
    %11 = vector.load %arg2[%c0_3, %c0_4] : memref<1x32xf32, #tpu.memory_space<vmem>>, vector<1x32xf32>
    %12 = vector.broadcast %11 : vector<1x32xf32> to vector<16x32xf32>
    %13 = arith.mulf %10, %12 : vector<16x32xf32>
    %14 = arith.truncf %13 : vector<16x32xf32> to vector<16x32xbf16>
    %c0_5 = arith.constant 0 : index
    %c0_6 = arith.constant 0 : index
    %15 = vector.load %arg3[%c0_5, %c0_6] : memref<32x128xbf16, #tpu.memory_space<vmem>>, vector<32x128xbf16>
    %cst_7 = arith.constant dense<0.000000e+00> : vector<16x128xf32>
    %16 = tpu.matmul %14, %15, %cst_7 {dimension_numbers = #tpu.dot_dimension_numbers<[1], [0], [0], [1], [0, 0, 1, 1], [], []>} : vector<16x32xbf16>, vector<32x128xbf16>, vector<16x128xf32> -> vector<16x128xf32>
    %c0_8 = arith.constant 0 : index
    %c0_9 = arith.constant 0 : index
    %17 = vector.load %arg4[%c0_8, %c0_9] : memref<16x128xf32, #tpu.memory_space<vmem>>, vector<16x128xf32>
    tpu.vector_store %arg4[%c0_8, %c0_9], %16 {strides = array<i32>} : memref<16x128xf32, #tpu.memory_space<vmem>>, vector<16x128xf32>,
    return
  }
  func.func @transform_0(%arg0: i32) -> (i32, i32) {
    %c0_i32 = arith.constant 0 : i32
    %c0_i32_0 = arith.constant 0 : i32
    return %arg0, %c0_i32 : i32, i32
  }
  func.func @transform_1(%arg0: i32) -> (i32, i32) {
    %c0_i32 = arith.constant 0 : i32
    %c0_i32_0 = arith.constant 0 : i32
    %c0_i32_1 = arith.constant 0 : i32
    return %c0_i32, %c0_i32_0 : i32, i32
  }
  func.func @transform_2(%arg0: i32) -> (i32, i32) {
    %c0_i32 = arith.constant 0 : i32
    %c0_i32_0 = arith.constant 0 : i32
    %c0_i32_1 = arith.constant 0 : i32
    return %c0_i32, %c0_i32_0 : i32, i32
  }
  func.func @transform_3(%arg0: i32) -> (i32, i32) {
    %c0_i32 = arith.constant 0 : i32
    %c0_i32_0 = arith.constant 0 : i32
    return %arg0, %c0_i32 : i32, i32
  }
}

</mosaic_0001>

<llo_original>
// kernel: tpu_custom_call.1
$region0: #{tpu_custom_call.1}
  #allocation0 [shape = 'u32[]', space=smem, size = 0x4, offset = 0x4, fixed_abs, tag = 'smem constant byte address 0x4 - core index']
  #allocation1 [shape = 'u32[144,128]{1,0:T(1,128)}', space=vmem, size = 0x12000, scoped, tag = 'internal scratch']
  %s0 = inlined_call_operand.hbm [shape: f32[16,32], index: 0, kind: input, shape index: {}]
  %s1 = inlined_call_operand.vmem [shape: f32[1,32], index: 1, kind: input, shape index: {}]
  %s2 = inlined_call_operand.hbm [shape: bf16[32,128], index: 2, kind: input, shape index: {}]
  %s3 = inlined_call_operand.hbm [shape: f32[16,128], index: 3, kind: output, shape index: {}]
  %s4 = sld [smem:[#allocation0]]
  $region30: #{tpu_custom_call.1} parent=0
    _
  %s6 = ssub.s32 1, %s4
  %s7 = scalar_select 0, %s6, %s4
  $region1: #{tpu_custom_call.1} parent=0
    #allocation2 [shape = 'u8[8192]{0}', space=vmem, size = 0x2000, scoped, tag = 'input window, operand 0, single buffered']
    #allocation3 [shape = 's32[1]{0}', space=sflag, size = 0x4, scoped, tag = 'scoped memory for tpu_custom_call.1']
    #allocation4 [shape = 's32[1]{0}', space=sflag, size = 0x4, scoped, tag = 'scoped memory for tpu_custom_call.1']
    #allocation5 [shape = 'u8[8192]{0}', space=vmem, size = 0x2000, scoped, tag = 'input window, operand 2, single buffered']
    #allocation6 [shape = 's32[1]{0}', space=sflag, size = 0x4, scoped, tag = 'scoped memory for tpu_custom_call.1']
    #allocation7 [shape = 'u8[8192]{0}', space=vmem, size = 0x2000, scoped, tag = 'output window, operand 0, single buffered']
    %8 = vsyncpa [#allocation3], 0
    %9 = vsyncpa [#allocation6], 0
    %10 = vsyncpa [#allocation4], 0
    // Predicated region
    $region2: #{tpu_custom_call.1} parent=1 // pred_check
      _
    $region3: #{tpu_custom_call.1} parent=1 // pred_check_branch
      %12 = sbr.rel (0) target = $region5
    $region4: #{tpu_custom_call.1} parent=1 // pred_region
      %s14 = ssub.s32 256, 256
      %15 = vsyncadd [#allocation3], %s14
      %s16 = sshll.u32 [#allocation2], 4
      %s17 = int_to_ptr.vmem [resolvable:$true] %s16
      %22 = dma.hbm_to_vmem [thread:$0]  %s0, 256, %s17, [#allocation3], 128, 128, 8
    $region5: #{tpu_custom_call.1} parent=1 // pred_fallthru
      _
    // Predicated region
    $region6: #{tpu_custom_call.1} parent=1 // pred_check
      _
    $region7: #{tpu_custom_call.1} parent=1 // pred_check_branch
      %24 = sbr.rel (0) target = $region9
    $region8: #{tpu_custom_call.1} parent=1 // pred_region
      _
    $region9: #{tpu_custom_call.1} parent=1 // pred_fallthru
      _
    // Predicated region
    $region10: #{tpu_custom_call.1} parent=1 // pred_check
      _
    $region11: #{tpu_custom_call.1} parent=1 // pred_check_branch
      %26 = sbr.rel (0) target = $region13
    $region12: #{tpu_custom_call.1} parent=1 // pred_region
      %s28 = ssub.s32 256, 256
      %29 = vsyncadd [#allocation6], %s28
      %s30 = sshll.u32 [#allocation5], 4
      %s31 = int_to_ptr.vmem [resolvable:$true] %s30
      %36 = dma.hbm_to_vmem [thread:$0]  %s2, 256, %s31, [#allocation6], 64, 64, 4
    $region13: #{tpu_custom_call.1} parent=1 // pred_fallthru
      _
    // Predicated region
    $region14: #{tpu_custom_call.1} parent=1 // pred_check
      _
    $region15: #{tpu_custom_call.1} parent=1 // pred_check_branch
      %38 = sbr.rel (0) target = $region17
    $region16: #{tpu_custom_call.1} parent=1 // pred_region
      %39 = dma.done [#allocation3], 256
    $region17: #{tpu_custom_call.1} parent=1 // pred_fallthru
      _
    // Predicated region
    $region18: #{tpu_custom_call.1} parent=1 // pred_check
      _
    $region19: #{tpu_custom_call.1} parent=1 // pred_check_branch
      %41 = sbr.rel (0) target = $region21
    $region20: #{tpu_custom_call.1} parent=1 // pred_region
      %42 = dma.done [#allocation6], 256
    $region21: #{tpu_custom_call.1} parent=1 // pred_fallthru
      _
    %v44 = vld [vmem:[#allocation2] sm:$0xff]
    %v45 = vld [vmem:[#allocation2 + $0x8] sm:$0xff]
    %v46 = vmul.f32 %v44, %v44
    %v47 = vmul.f32 %v45, %v45
    %vm48 = vcmask 261120
    %v49 = vsel %vm48, %v46, 0.0
    %50 = vadd.xlane.f32.xlu0 %v49
    %v51 = vpop.xlane.xlu0 %50
    %v52 = vsel %vm48, %v47, 0.0
    %53 = vadd.xlane.f32.xlu0 %v52
    %v54 = vpop.xlane.xlu0 %53
    %v55 = vrcp.pop 32.0
    %v56 = vmul.f32 %v51, %v55
    %v57 = vmul.f32 %v54, %v55
    %v58 = vadd.f32 %v56, 1e-06
    %v59 = vadd.f32 %v57, 1e-06
    %v60 = vrsqrt.pop %v58
    %v61 = vrsqrt.pop %v59
    %v62 = vmul.f32 %v44, %v60
    %v63 = vmul.f32 %v45, %v61
    %v64 = vld [vmem:[%s1] sm:$0x1]
    %v66 = vlaneseq
    %v67 = vshrl.u32 %v66, 7
    %v68 = vsub.s32 0, %v67
    %v69 = vrot.slane %v64, %v68
    %v71 = vmul.f32 %v62, %v69
    %v72 = vmul.f32 %v63, %v69
    %v73 = vpack.c.bf16 %v72, %v71
    %v74 = vld [vmem:[#allocation5] sm:$0xf]
    %v75 = vld [vmem:[#allocation5 + $0x4] sm:$0xf]
    %v76 = vld [vmem:[#allocation5 + $0x8] sm:$0xf]
    %v77 = vld [vmem:[#allocation5 + $0xc] sm:$0xf]
    %v82 = vunpack.c.l.b16 %v74
    %v83 = vunpack.c.l.b16 %v75
    %v84 = vunpack.c.l.b16 %v76
    %v85 = vunpack.c.l.b16 %v77
    %v86 = vpack.c.b16 %v83, %v82
    %v87 = vpack.c.b16 %v85, %v84
    %v91 = vsel %vm48, %v73, 0
    %93 = vmatprep.subr.bf16.mxu0 0
    %94 = vmatpush1.bf16.msra.mxu0 %v86
    %95 = vmatprep.subr.bf16.mxu0 0
    %96 = vmatpush1.bf16.msra.mxu0 %v87
    %97 = vmatprep.subr.bf16.mxu0 0
    %98 = vmatpush1.bf16.msra.mxu0 0
    %99 = vmatprep.subr.bf16.mxu0 0
    %100 = vmatpush1.bf16.msra.mxu0 0
    %101 = vmatprep.subr.bf16.mxu0 0
    %102 = vmatpush1.bf16.msra.mxu0 0
    %103 = vmatprep.subr.bf16.mxu0 0
    %104 = vmatpush1.bf16.msra.mxu0 0
    %105 = vmatprep.subr.bf16.mxu0 0
    %106 = vmatpush1.bf16.msra.mxu0 0
    %107 = vmatprep.subr.bf16.mxu0 0
    %108 = vmatpush1.bf16.msra.mxu0 0
    %109 = vmatprep.subr.bf16.mxu0 0
    %110 = vmatpush1.bf16.msra.mxu0 0
    %111 = vmatprep.subr.bf16.mxu0 0
    %112 = vmatpush1.bf16.msra.mxu0 0
    %113 = vmatprep.subr.bf16.mxu0 0
    %114 = vmatpush1.bf16.msra.mxu0 0
    %115 = vmatprep.subr.bf16.mxu0 0
    %116 = vmatpush1.bf16.msra.mxu0 0
    %117 = vmatprep.subr.bf16.mxu0 0
    %118 = vmatpush1.bf16.msra.mxu0 0
    %119 = vmatprep.subr.bf16.mxu0 0
    %120 = vmatpush1.bf16.msra.mxu0 0
    %121 = vmatprep.subr.bf16.mxu0 0
    %122 = vmatpush1.bf16.msra.mxu0 0
    %123 = vmatprep.subr.bf16.mxu0 0
    %124 = vmatpush1.bf16.msra.mxu0 0
    %125 = vmatprep.mubr.bf16.mxu0 0
    %126 = vmatmul.mubr.bf16.gmra.mrb[0].mxu0 %v91
    %v127 = vpop.f32.mrb[0].mxu0
    %v128 = vadd.f32 0.0, %v127
    %v129 = vpop.f32.mrb[0].mxu0
    %v130 = vpop.f32.mrb[0].mxu0
    %v131 = vadd.f32 0.0, %v130
    %v132 = vpop.f32.mrb[0].mxu0
    %133 = vdwg.mxu0
    %134 = vst [vmem:[#allocation7] sm:$0xff] %v128
    %135 = vst [vmem:[#allocation7 + $0x8] sm:$0xff] %v131
    // Predicated region
    $region22: #{tpu_custom_call.1} parent=1 // pred_check
      _
    $region23: #{tpu_custom_call.1} parent=1 // pred_check_branch
      %137 = sbr.rel (0) target = $region25
    $region24: #{tpu_custom_call.1} parent=1 // pred_region
      %s139 = ssub.s32 256, 256
      %140 = vsyncadd [#allocation4], %s139
      %s141 = sshll.u32 [#allocation7], 4
      %s142 = int_to_ptr.vmem [resolvable:$true] %s141
      %147 = dma.vmem_to_hbm [thread:$0]  %s142, 256, %s3, [#allocation4], 128, 128, 8
    $region25: #{tpu_custom_call.1} parent=1 // pred_fallthru
      _
    // Predicated region
    $region26: #{tpu_custom_call.1} parent=1 // pred_check
      _
    $region27: #{tpu_custom_call.1} parent=1 // pred_check_branch
      %149 = sbr.rel (0) target = $region29
    $region28: #{tpu_custom_call.1} parent=1 // pred_region
      %150 = dma.done [#allocation4], 256
    $region29: #{tpu_custom_call.1} parent=1 // pred_fallthru
      _
    %151 = vsyncpa [#allocation3], 1
    %152 = vsyncpa [#allocation6], 1
    %153 = vsyncpa [#allocation4], 1

</llo_original>
